<compile_context>
chip_gen: v7x
topology: tpu7x:2x2x1
jax: 0.10.0
libtpu: 0.0.40
codegen_flags: <defaults>
</compile_context>

<pallas_src>
import math

import jax
import jax.numpy as jnp
from jax.experimental import pallas as pl
from jax.experimental.pallas import tpu as pltpu


# ---------------------------------------------------------------------------
# VMEM budget
# ---------------------------------------------------------------------------
_VMEM_LIMIT_BYTES = 48 * 1024 * 1024   # < v7x 64 MiB physical; >> v5e/v6e defaults
_WORKSET_FRACTION = 0.60               # headroom for compiler temporaries / spill


def _max_block_elems(itemsize):
    """Max elements per block so the working set stays inside the VMEM budget.

    Per block element:
      * 2 inputs + 1 output, each double-buffered by the pipeline -> 6 * itemsize
      * ~3 f32 in-kernel temporaries (mlp_f32, exp, softmax)      -> 12 bytes
    """
    per_elem = 6 * itemsize + 3 * 4
    budget = int(_VMEM_LIMIT_BYTES * _WORKSET_FRACTION)
    return max(budget // per_elem, 8 * 128)


def _largest_divisor_leq(n, cap, max_search=256):
    """Largest divisor of n that is <= cap (bounded search; falls back to 1)."""
    cap = max(1, min(n, cap))
    for d in range(cap, max(0, cap - max_search), -1):
        if n % d == 0:
            return d
    return 1


def _pick_spatial_tile(S, C, max_elems):
    """Largest lane-dense (multiple-of-128) tile whose (C, tile) block fits."""
    if S <= 128:
        return S
    t = (max_elems // max(C, 1)) // 128 * 128
    t = max(128, min(t, (S // 128) * 128))
    # Prefer a tile that divides S (no masked tail), but never shrink below
    # half the budgeted width just to get divisibility.
    floor = max(128, t // 2)
    cand = t
    while cand >= floor:
        if S % cand == 0:
            return cand
        cand -= 128
    return t  # non-divisor: cdiv grid, only the final tile is partially masked


# ---------------------------------------------------------------------------
# kernels
# ---------------------------------------------------------------------------
def _mlp_attention_kernel(cnn_ref, mlp_ref, o_ref):
    """Blocks are (bt, C, T): softmax over the channel axis (axis=1, sublanes)."""
    mlp = mlp_ref[...].astype(jnp.float32)             # softmax math in f32
    m = jnp.max(mlp, axis=1, keepdims=True)            # XLU sublane reduce
    e = jnp.exp(mlp - m)                                # EUP
    a = e / jnp.sum(e, axis=1, keepdims=True)           # exact softmax over C
    cnn = cnn_ref[...]                                   # stays in native dtype
    o_ref[...] = (cnn * a.astype(cnn.dtype) + cnn).astype(o_ref.dtype)


def _mlp_attention_kernel_lanes(cnn_ref, mlp_ref, o_ref):
    """Blocks are (bt, C): softmax over the trailing (lane) axis."""
    mlp = mlp_ref[...].astype(jnp.float32)
    m = jnp.max(mlp, axis=-1, keepdims=True)
    e = jnp.exp(mlp - m)
    a = e / jnp.sum(e, axis=-1, keepdims=True)
    cnn = cnn_ref[...]
    o_ref[...] = (cnn * a.astype(cnn.dtype) + cnn).astype(o_ref.dtype)


# ---------------------------------------------------------------------------
# wrapper
# ---------------------------------------------------------------------------
def _implicit_softmax_dim(ndim):
    # Mirrors torch.nn.functional._get_softmax_dim for F.softmax(x) w/o dim.
    return 0 if ndim in (0, 1, 3) else 1


def mlp_attention_forward(out_cnn, out_mlp):
    """out_cnn, out_mlp: identically shaped feature maps (e.g. NCHW / NCDHW)."""
    assert out_cnn.shape == out_mlp.shape, (out_cnn.shape, out_mlp.shape)
    shape = out_cnn.shape
    if out_cnn.ndim == 0:
        return out_cnn + out_cnn   # softmax of a scalar is 1 -> x*1 + x

    dim = _implicit_softmax_dim(out_cnn.ndim)
    B = int(math.prod(shape[:dim]))
    C = int(shape[dim])
    S = max(int(math.prod(shape[dim + 1:])), 1)

    itemsize = jnp.dtype(out_cnn.dtype).itemsize
    max_elems = _max_block_elems(itemsize)

    # ---- degenerate trailing extent (e.g. 2-D inputs): put C on lanes ------
    if S == 1:
        cnn2 = out_cnn.reshape(B, C)
        mlp2 = out_mlp.reshape(B, C)
        bt = min(B, max(1, max_elems // max(C, 1)))
        if bt < B:
            bt = max(8, (bt // 8) * 8)        # keep sublane-axis (8,.) alignment
        grid = (pl.cdiv(B, bt),)
        spec = pl.BlockSpec((bt, C), lambda i: (i, 0))
        out = pl.pallas_call(
            _mlp_attention_kernel_lanes,
            out_shape=jax.ShapeDtypeStruct((B, C), out_cnn.dtype),
            grid=grid,
            in_specs=[spec, spec],
            out_specs=spec,
            compiler_params=pltpu.CompilerParams(
                dimension_semantics=("parallel",),
                vmem_limit_bytes=_VMEM_LIMIT_BYTES),
        )(cnn2, mlp2)
        return out.reshape(shape)

    # ---- main path: collapse to (B, C, S), softmax over C ------------------
    cnn3 = out_cnn.reshape(B, C, S)
    mlp3 = out_mlp.reshape(B, C, S)
    row_elems = C * S

    if row_elems <= max_elems:
        # Batch blocking: (bt, C, S) blocks are fully contiguous in HBM.
        bt_cap = max(1, max_elems // row_elems)
        if B >= 2:
            bt_cap = min(bt_cap, max(1, B // 2))   # >=2 grid steps (v7x megacore)
        bt = _largest_divisor_leq(B, bt_cap)
        grid = (B // bt,)
        spec = pl.BlockSpec((bt, C, S), lambda i: (i, 0, 0))
        dims = ("parallel",)
    else:
        # Spatial blocking: lane-dense (1, C, tile) blocks sized to the budget.
        tile = _pick_spatial_tile(S, C, max_elems)
        grid = (B, pl.cdiv(S, tile))
        spec = pl.BlockSpec((1, C, tile), lambda b, s: (b, 0, s))
        dims = ("parallel", "parallel")

    out = pl.pallas_call(
        _mlp_attention_kernel,
        out_shape=jax.ShapeDtypeStruct((B, C, S), out_cnn.dtype),
        grid=grid,
        in_specs=[spec, spec],
        out_specs=spec,
        compiler_params=pltpu.CompilerParams(
            dimension_semantics=dims,
            vmem_limit_bytes=_VMEM_LIMIT_BYTES),
    )(cnn3, mlp3)
    return out.reshape(shape)


# ---------------------------------------------------------------------------
# demo / self-check
# ---------------------------------------------------------------------------
if __name__ == "__main__":
    key = jax.random.PRNGKey(0)
    k1, k2, k3, k4 = jax.random.split(key, 4)

    # Primary use case: small NCHW feature maps (exercises the batch-blocking path).
    B, C, H, W = 2, 4, 16, 16
    out_cnn = jax.random.normal(k1, (B, C, H, W), dtype=jnp.float32)
    out_mlp = jax.random.normal(k2, (B, C, H, W), dtype=jnp.float32)

    out = jax.block_until_ready(mlp_attention_forward(out_cnn, out_mlp))
    assert out.shape == (B, C, H, W), out.shape
    assert bool(jnp.isfinite(out).all())

    a_ref = jax.nn.softmax(out_mlp, axis=1)        # F.softmax implicit dim=1 (4-D)
    ref = out_cnn * a_ref + out_cnn
    max_err = float(jnp.max(jnp.abs(out - ref)))
    assert jnp.allclose(out, ref, atol=1e-5, rtol=1e-5), max_err

    # Edge case: 2-D input (exercises the lane-axis softmax path, implicit dim=1).
    N, Feat = 4, 256
    cnn2 = jax.random.normal(k3, (N, Feat), dtype=jnp.float32)
    mlp2 = jax.random.normal(k4, (N, Feat), dtype=jnp.float32)
    out2 = jax.block_until_ready(mlp_attention_forward(cnn2, mlp2))
    ref2 = cnn2 * jax.nn.softmax(mlp2, axis=1) + cnn2
    max_err2 = float(jnp.max(jnp.abs(out2 - ref2)))
    assert jnp.allclose(out2, ref2, atol=1e-5, rtol=1e-5), max_err2

    print("KERNEL_OK")
</pallas_src>

<mosaic_0001>
module attributes {stable_mosaic.version = 11 : i64} {
  func.func @_mlp_attention_kernel(%arg0: i32, %arg1: memref<1x4x256xf32, #tpu.memory_space<vmem>>, %arg2: memref<1x4x256xf32, #tpu.memory_space<vmem>>, %arg3: memref<1x4x256xf32, #tpu.memory_space<vmem>>) attributes {dimension_semantics = [#tpu.dimension_semantics<parallel>], iteration_bounds = array<i64: 2>, scalar_prefetch = 0 : i64, scratch_operands = 0 : i64, tpu.core_type = #tpu.core_type<tc>, window_params = [{transform_indices = @transform_0, window_bounds = array<i64: 1, 4, 256>}, {transform_indices = @transform_1, window_bounds = array<i64: 1, 4, 256>}, {transform_indices = @transform_2, window_bounds = array<i64: 1, 4, 256>}]} {
    %c0 = arith.constant 0 : index
    %c0_0 = arith.constant 0 : index
    %c0_1 = arith.constant 0 : index
    %0 = vector.load %arg2[%c0, %c0_0, %c0_1] : memref<1x4x256xf32, #tpu.memory_space<vmem>>, vector<1x4x256xf32>
    %cst = arith.constant dense<0xFF800000> : vector<1x256xf32>
    %1 = vector.multi_reduction <maximumf>, %0, %cst [1] : vector<1x4x256xf32> to vector<1x256xf32>
    %2 = vector.shape_cast %1 : vector<1x256xf32> to vector<1x1x256xf32>
    %3 = vector.broadcast %2 : vector<1x1x256xf32> to vector<1x4x256xf32>
    %4 = arith.subf %0, %3 : vector<1x4x256xf32>
    %5 = math.exp %4 : vector<1x4x256xf32>
    %cst_2 = arith.constant dense<0.000000e+00> : vector<1x256xf32>
    %6 = vector.multi_reduction <add>, %5, %cst_2 [1] : vector<1x4x256xf32> to vector<1x256xf32>
    %7 = vector.shape_cast %6 : vector<1x256xf32> to vector<1x1x256xf32>
    %8 = vector.broadcast %7 : vector<1x1x256xf32> to vector<1x4x256xf32>
    %9 = arith.divf %5, %8 : vector<1x4x256xf32>
    %c0_3 = arith.constant 0 : index
    %c0_4 = arith.constant 0 : index
    %c0_5 = arith.constant 0 : index
    %10 = vector.load %arg1[%c0_3, %c0_4, %c0_5] : memref<1x4x256xf32, #tpu.memory_space<vmem>>, vector<1x4x256xf32>
    %11 = arith.mulf %10, %9 : vector<1x4x256xf32>
    %12 = arith.addf %11, %10 : vector<1x4x256xf32>
    %c0_6 = arith.constant 0 : index
    %c0_7 = arith.constant 0 : index
    %c0_8 = arith.constant 0 : index
    %13 = vector.load %arg3[%c0_6, %c0_7, %c0_8] : memref<1x4x256xf32, #tpu.memory_space<vmem>>, vector<1x4x256xf32>
    tpu.vector_store %arg3[%c0_6, %c0_7, %c0_8], %12 {strides = array<i32>} : memref<1x4x256xf32, #tpu.memory_space<vmem>>, vector<1x4x256xf32>,
    return
  }
  func.func @transform_0(%arg0: i32) -> (i32, i32, i32) {
    %c0_i32 = arith.constant 0 : i32
    %c0_i32_0 = arith.constant 0 : i32
    %c0_i32_1 = arith.constant 0 : i32
    return %arg0, %c0_i32, %c0_i32_0 : i32, i32, i32
  }
  func.func @transform_1(%arg0: i32) -> (i32, i32, i32) {
    %c0_i32 = arith.constant 0 : i32
    %c0_i32_0 = arith.constant 0 : i32
    %c0_i32_1 = arith.constant 0 : i32
    return %arg0, %c0_i32, %c0_i32_0 : i32, i32, i32
  }
  func.func @transform_2(%arg0: i32) -> (i32, i32, i32) {
    %c0_i32 = arith.constant 0 : i32
    %c0_i32_0 = arith.constant 0 : i32
    %c0_i32_1 = arith.constant 0 : i32
    return %arg0, %c0_i32, %c0_i32_0 : i32, i32, i32
  }
}

</mosaic_0001>

<llo_original>
// kernel: tpu_custom_call.1
$region0: #{tpu_custom_call.1}
  #allocation0 [shape = 'u32[]', space=smem, size = 0x4, offset = 0x4, fixed_abs, tag = 'smem constant byte address 0x4 - core index']
  #allocation1 [shape = 'u32[144,128]{1,0:T(1,128)}', space=vmem, size = 0x12000, scoped, tag = 'internal scratch']
  %s0 = inlined_call_operand.hbm [shape: f32[2,4,256], index: 0, kind: input, shape index: {}]
  %s1 = inlined_call_operand.hbm [shape: f32[2,4,256], index: 1, kind: input, shape index: {}]
  %s2 = inlined_call_operand.hbm [shape: f32[2,4,256], index: 2, kind: output, shape index: {}]
  %s3 = sld [smem:[#allocation0]]
  $region49: #{tpu_custom_call.1} parent=0
    _
  %s5 = ssub.s32 1, %s3
  %s6 = scalar_select 0, %s5, %s3
  $region1: #{tpu_custom_call.1} parent=0
    #allocation2 [shape = 'u8[8192]{0}', space=vmem, size = 0x2000, scoped, tag = 'input window, operand 0']
    #allocation3 [shape = 's32[2]{0}', space=sflag, size = 0x8, scoped, tag = 'scoped memory for tpu_custom_call.1']
    #allocation4 [shape = 's32[2]{0}', space=sflag, size = 0x8, scoped, tag = 'scoped memory for tpu_custom_call.1']
    #allocation5 [shape = 'u8[8192]{0}', space=vmem, size = 0x2000, scoped, tag = 'input window, operand 1']
    #allocation6 [shape = 's32[2]{0}', space=sflag, size = 0x8, scoped, tag = 'scoped memory for tpu_custom_call.1']
    #allocation7 [shape = 'u8[8192]{0}', space=vmem, size = 0x2000, scoped, tag = 'output window, operand 0']
    %7 = vsyncpa [#allocation3], 0
    %s8 = scalar_lea.sflag [#allocation3], 1
    %9 = vsyncpa %s8, 0
    %10 = vsyncpa [#allocation6], 0
    %s11 = scalar_lea.sflag [#allocation6], 1
    %12 = vsyncpa %s11, 0
    %13 = vsyncpa [#allocation4], 0
    %s14 = scalar_lea.sflag [#allocation4], 1
    %15 = vsyncpa %s14, 0
    loop: start=0, step=1, limit=4
    $region2: #{tpu_custom_call.1} parent=1 // loop_pre_header
      _
    $region3: #{tpu_custom_call.1} parent=1 // loop_header
      %s17 = sphi 0, %s21
      %p18 = scmp.ge.s32.totalorder %s17, 4
      %s27 = sphi 0, %s29
      %s30 = sphi 0, %s27
      %s31 = sphi 0, %s30
      %s47 = sphi 0, %s31
      %s53 = sphi 0, %s55
      %s56 = sphi 0, %s53
      %s57 = sphi 0, %s56
      %s73 = sphi 0, %s57
      %s79 = sphi 0, %s81
      %s82 = sphi 0, %s79
      %s83 = sphi 0, %s82
      %s99 = sphi 0, %s83
    $region4: #{tpu_custom_call.1} parent=1 // loop_header_branch
      %20 = sbr.rel (%p18) target = $region8
    $region5: #{tpu_custom_call.1} parent=1 // loop_body
      %s22 = ssub.s32 %s17, 1
      %s23 = ssub.s32 %s17, 2
      %s24 = sadd.s32 %s17, 1
      %s25 = ssub.s32 %s17, %s24
      %p26 = scmp.eq.s32.totalorder %s25, 0
      %s28 = sadd.s32 %s27, 1
      %s29 = scalar_select %p26, %s27, %s28
      %p32 = pneg %p26
      %p33 = scmp.eq.s32.totalorder %s17, 1
      %p34 = por %p32, %p33
      %p35 = scmp.ne.s32.totalorder %s27, %s30
      %p36 = scmp.eq.s32.totalorder %s17, 0
      %p37 = por %p35, %p36
      %p38 = scmp.ne.s32.totalorder %s27, %s30
      %p39 = scmp.eq.s32.totalorder %s22, 1
      %p40 = por %p38, %p39
      %p41 = scmp.ne.s32.totalorder %s30, %s31
      %p42 = scmp.eq.s32.totalorder %s22, 0
      %p43 = por %p41, %p42
      %p44 = scmp.ne.s32.totalorder %s30, %s31
      %p45 = scmp.eq.s32.totalorder %s23, 1
      %p46 = por %p44, %p45
      %p48 = scmp.ne.s32.totalorder %s31, %s47
      %p49 = scmp.eq.s32.totalorder %s23, 0
      %p50 = por %p48, %p49
      %s51 = ssub.s32 %s17, %s24
      %p52 = scmp.eq.s32.totalorder %s51, 0
      %s54 = sadd.s32 %s53, 1
      %s55 = scalar_select %p52, %s53, %s54
      %p58 = pneg %p52
      %p59 = scmp.eq.s32.totalorder %s17, 1
      %p60 = por %p58, %p59
      %p61 = scmp.ne.s32.totalorder %s53, %s56
      %p62 = scmp.eq.s32.totalorder %s17, 0
      %p63 = por %p61, %p62
      %p64 = scmp.ne.s32.totalorder %s53, %s56
      %p65 = scmp.eq.s32.totalorder %s22, 1
      %p66 = por %p64, %p65
      %p67 = scmp.ne.s32.totalorder %s56, %s57
      %p68 = scmp.eq.s32.totalorder %s22, 0
      %p69 = por %p67, %p68
      %p70 = scmp.ne.s32.totalorder %s56, %s57
      %p71 = scmp.eq.s32.totalorder %s23, 1
      %p72 = por %p70, %p71
      %p74 = scmp.ne.s32.totalorder %s57, %s73
      %p75 = scmp.eq.s32.totalorder %s23, 0
      %p76 = por %p74, %p75
      %s77 = ssub.s32 %s17, %s24
      %p78 = scmp.eq.s32.totalorder %s77, 0
      %s80 = sadd.s32 %s79, 1
      %s81 = scalar_select %p78, %s79, %s80
      %p84 = pneg %p78
      %p85 = scmp.eq.s32.totalorder %s17, 1
      %p86 = por %p84, %p85
      %p87 = scmp.ne.s32.totalorder %s79, %s82
      %p88 = scmp.eq.s32.totalorder %s17, 0
      %p89 = por %p87, %p88
      %p90 = scmp.ne.s32.totalorder %s79, %s82
      %p91 = scmp.eq.s32.totalorder %s22, 1
      %p92 = por %p90, %p91
      %p93 = scmp.ne.s32.totalorder %s82, %s83
      %p94 = scmp.eq.s32.totalorder %s22, 0
      %p95 = por %p93, %p94
      %p96 = scmp.ne.s32.totalorder %s82, %s83
      %p97 = scmp.eq.s32.totalorder %s23, 1
      %p98 = por %p96, %p97
      %p100 = scmp.ne.s32.totalorder %s83, %s99
      %p101 = scmp.eq.s32.totalorder %s23, 0
      %p102 = por %p100, %p101
      %p103 = scmp.le.s32.totalorder 1, %s17
      %p104 = scmp.lt.s32.totalorder %s17, 3
      %p105 = pnand %p103, %p104
      %p106 = pneg %p105
      // Predicated region
      $region9: #{tpu_custom_call.1} parent=5 // pred_check
        _
      $region10: #{tpu_custom_call.1} parent=5 // pred_check_branch
        %108 = sbr.rel (%p105) target = $region12
      $region11: #{tpu_custom_call.1} parent=5 // pred_region
        %s109 = ssub.s32 %s17, 1
      $region12: #{tpu_custom_call.1} parent=5 // pred_fallthru
        _
      %p110 = scmp.lt.s32.totalorder %s17, 2
      // Predicated region
      $region13: #{tpu_custom_call.1} parent=5 // pred_check
        %p111 = pneg %p110
      $region14: #{tpu_custom_call.1} parent=5 // pred_check_branch
        %113 = sbr.rel (%p111) target = $region16
      $region15: #{tpu_custom_call.1} parent=5 // pred_region
        // Predicated region
        $region17: #{tpu_custom_call.1} parent=15 // pred_check
          %p114 = pneg %p37
        $region18: #{tpu_custom_call.1} parent=15 // pred_check_branch
          %116 = sbr.rel (%p114) target = $region20
        $region19: #{tpu_custom_call.1} parent=15 // pred_region
          %s117 = sand.u32 %s27, 1
          %s118 = scalar_lea.sflag [#allocation3], %s117
          %s119 = sand.u32 %s27, 1
          %s120 = smul.addr %s119, 8
          %s121 = scalar_lea.vmem [#allocation2], %s120
          %s123 = ssub.s32 128, 128
          %124 = vsyncadd %s118, %s123
          %s125 = smul.addr %s17, 2
          %s126 = smul.addr %s125, 64
          %s127 = scalar_lea.hbm %s0, %s126
          %s129 = sshll.u32 %s121, 4
          %s130 = int_to_ptr.vmem [resolvable:$true] %s129
          %132 = dma.hbm_to_vmem [thread:$0]  %s127, 128, %s130, %s118
        $region20: #{tpu_custom_call.1} parent=15 // pred_fallthru
          _
        // Predicated region
        $region21: #{tpu_custom_call.1} parent=15 // pred_check
          %p133 = pneg %p63
        $region22: #{tpu_custom_call.1} parent=15 // pred_check_branch
          %135 = sbr.rel (%p133) target = $region24
        $region23: #{tpu_custom_call.1} parent=15 // pred_region
          %s136 = sand.u32 %s53, 1
          %s137 = scalar_lea.sflag [#allocation6], %s136
          %s138 = sand.u32 %s53, 1
          %s139 = smul.addr %s138, 8
          %s140 = scalar_lea.vmem [#allocation5], %s139
          %s142 = ssub.s32 128, 128
          %143 = vsyncadd %s137, %s142
          %s144 = smul.addr %s17, 2
          %s145 = smul.addr %s144, 64
          %s146 = scalar_lea.hbm %s1, %s145
          %s148 = sshll.u32 %s140, 4
          %s149 = int_to_ptr.vmem [resolvable:$true] %s148
          %151 = dma.hbm_to_vmem [thread:$0]  %s146, 128, %s149, %s137
        $region24: #{tpu_custom_call.1} parent=15 // pred_fallthru
          _
      $region16: #{tpu_custom_call.1} parent=5 // pred_fallthru
        _
      %p152 = scmp.le.s32.totalorder 1, %s17
      %p153 = scmp.lt.s32.totalorder %s17, 3
      %p154 = pnand %p152, %p153
      %p155 = pneg %p154
      // Predicated region
      $region25: #{tpu_custom_call.1} parent=5 // pred_check
        _
      $region26: #{tpu_custom_call.1} parent=5 // pred_check_branch
        %157 = sbr.rel (%p154) target = $region28
      $region27: #{tpu_custom_call.1} parent=5 // pred_region
        %s158 = ssub.s32 %s17, 1
        %s159 = sand.u32 %s30, 1
        %s160 = scalar_lea.sflag [#allocation3], %s159
        %s161 = sand.u32 %s30, 1
        %s162 = smul.addr %s161, 8
        %s163 = scalar_lea.vmem [#allocation2], %s162
        // Predicated region
        $region29: #{tpu_custom_call.1} parent=27 // pred_check
          %p164 = pneg %p43
        $region30: #{tpu_custom_call.1} parent=27 // pred_check_branch
          %166 = sbr.rel (%p164) target = $region32
        $region31: #{tpu_custom_call.1} parent=27 // pred_region
          %167 = dma.done %s160, 128
        $region32: #{tpu_custom_call.1} parent=27 // pred_fallthru
          _
        %s168 = sand.u32 %s56, 1
        %s169 = scalar_lea.sflag [#allocation6], %s168
        %s170 = sand.u32 %s56, 1
        %s171 = smul.addr %s170, 8
        %s172 = scalar_lea.vmem [#allocation5], %s171
        // Predicated region
        $region33: #{tpu_custom_call.1} parent=27 // pred_check
          %p173 = pneg %p69
        $region34: #{tpu_custom_call.1} parent=27 // pred_check_branch
          %175 = sbr.rel (%p173) target = $region36
        $region35: #{tpu_custom_call.1} parent=27 // pred_region
          %176 = dma.done %s169, 128
        $region36: #{tpu_custom_call.1} parent=27 // pred_fallthru
          _
        %s177 = sand.u32 %s30, 1
        %s178 = scalar_lea.sflag [#allocation3], %s177
        %s179 = sand.u32 %s30, 1
        %s180 = smul.addr %s179, 8
        %s181 = scalar_lea.vmem [#allocation2], %s180
        %p182 = pneg %p43
        %p183 = pneg %p40
        %s184 = sand.u32 %s56, 1
        %s185 = scalar_lea.sflag [#allocation6], %s184
        %s186 = sand.u32 %s56, 1
        %s187 = smul.addr %s186, 8
        %s188 = scalar_lea.vmem [#allocation5], %s187
        %p189 = pneg %p69
        %p190 = pneg %p66
        %p191 = pneg %p95
        %p192 = pneg %p92
        %s193 = sand.u32 %s82, 1
        %s194 = scalar_lea.sflag [#allocation4], %s193
        %s195 = sand.u32 %s82, 1
        %s196 = smul.addr %s195, 8
        %s197 = scalar_lea.vmem [#allocation7], %s196
        %v198 = vld [vmem:[%s172] sm:$0xff]
        %v200 = vcombine.high %v198, %v198
        %vm202 = vcmask 1043456
        %v203 = vsel %vm202, %v198, -inf
        %v204 = vrot.slane %v203, 4
        %v205 = vmax.f32 %v203, %v204
        %v206 = vrot.slane %v205, 2
        %v207 = vmax.f32 %v205, %v206
        %v208 = vrot.slane %v207, 1
        %v209 = vmax.f32 %v207, %v208
        %v210 = vsel %vm202, %v200, -inf
        %v211 = vrot.slane %v210, 4
        %v212 = vmax.f32 %v210, %v211
        %v213 = vrot.slane %v212, 2
        %v214 = vmax.f32 %v212, %v213
        %v215 = vrot.slane %v214, 1
        %v216 = vmax.f32 %v214, %v215
        %v219 = vcombine.low %v209, %v216
        %v221 = vsub.f32 %v198, %v219
        %v222 = vmul.f32 %v221, 1.442695
        %v223 = vpow.pop %v222
        %v225 = vcombine.high %v223, %v223
        %v227 = vsel %vm202, %v223, 0.0
        %v228 = vrot.slane %v227, 4
        %v229 = vadd.f32 %v227, %v228
        %v230 = vrot.slane %v229, 2
        %v231 = vadd.f32 %v229, %v230
        %v232 = vrot.slane %v231, 1
        %v233 = vadd.f32 %v231, %v232
        %v234 = vsel %vm202, %v225, 0.0
        %v235 = vrot.slane %v234, 4
        %v236 = vadd.f32 %v234, %v235
        %v237 = vrot.slane %v236, 2
        %v238 = vadd.f32 %v236, %v237
        %v239 = vrot.slane %v238, 1
        %v240 = vadd.f32 %v238, %v239
        %v243 = vcombine.low %v233, %v240
        %v245 = vrcp.pop %v243
        %v246 = vmul.f32 %v223, %v245
        %v247 = vld [vmem:[%s163] sm:$0xff]
        %v248 = vmul.f32 %v247, %v246
        %v249 = vadd.f32 %v248, %v247
        %250 = vst [vmem:[%s197] sm:$0xff] %v249
        %s251 = sand.u32 %s82, 1
        %s252 = scalar_lea.sflag [#allocation4], %s251
        %s253 = sand.u32 %s82, 1
        %s254 = smul.addr %s253, 8
        %s255 = scalar_lea.vmem [#allocation7], %s254
        // Predicated region
        $region37: #{tpu_custom_call.1} parent=27 // pred_check
          %p256 = pneg %p92
        $region38: #{tpu_custom_call.1} parent=27 // pred_check_branch
          %258 = sbr.rel (%p256) target = $region40
        $region39: #{tpu_custom_call.1} parent=27 // pred_region
          %s260 = ssub.s32 128, 128
          %261 = vsyncadd %s252, %s260
          %s262 = smul.addr %s22, 2
          %s263 = smul.addr %s262, 64
          %s264 = scalar_lea.hbm %s2, %s263
          %s266 = sshll.u32 %s255, 4
          %s267 = int_to_ptr.vmem [resolvable:$true] %s266
          %269 = dma.vmem_to_hbm [thread:$0]  %s267, 128, %s264, %s252
        $region40: #{tpu_custom_call.1} parent=27 // pred_fallthru
          _
      $region28: #{tpu_custom_call.1} parent=5 // pred_fallthru
        _
      %p270 = scmp.le.s32.totalorder 2, %s17
      // Predicated region
      $region41: #{tpu_custom_call.1} parent=5 // pred_check
        %p271 = pneg %p270
      $region42: #{tpu_custom_call.1} parent=5 // pred_check_branch
        %273 = sbr.rel (%p271) target = $region44
      $region43: #{tpu_custom_call.1} parent=5 // pred_region
        %s274 = ssub.s32 %s17, 2
        // Predicated region
        $region45: #{tpu_custom_call.1} parent=43 // pred_check
          %p275 = pneg %p98
        $region46: #{tpu_custom_call.1} parent=43 // pred_check_branch
          %277 = sbr.rel (%p275) target = $region48
        $region47: #{tpu_custom_call.1} parent=43 // pred_region
          %s278 = sand.u32 %s83, 1
          %s279 = scalar_lea.sflag [#allocation4], %s278
          %s280 = sand.u32 %s83, 1
          %s281 = smul.addr %s280, 8
          %s282 = scalar_lea.vmem [#allocation7], %s281
          %283 = dma.done %s279, 128
        $region48: #{tpu_custom_call.1} parent=43 // pred_fallthru
          _
      $region44: #{tpu_custom_call.1} parent=5 // pred_fallthru
        _
    $region6: #{tpu_custom_call.1} parent=1 // loop_footer
      %s21 = sadd.s32 1, %s17
    $region7: #{tpu_custom_call.1} parent=1 // loop_footer_branch
      %16 = sbr.rel target = $region3
    $region8: #{tpu_custom_call.1} parent=1 // loop_exit
      _
    %284 = vsyncpa [#allocation3], 1
    %s285 = scalar_lea.sflag [#allocation3], 1
    %286 = vsyncpa %s285, 1
    %287 = vsyncpa [#allocation6], 1
    %s288 = scalar_lea.sflag [#allocation6], 1
    %289 = vsyncpa %s288, 1
    %290 = vsyncpa [#allocation4], 1
    %s291 = scalar_lea.sflag [#allocation4], 1
    %292 = vsyncpa %s291, 1

</llo_original>
